<compile_context>
chip_gen: v5e
topology: v5e:2x2
jax: 0.10.0
libtpu: 0.0.40
codegen_flags: <defaults>
</compile_context>

<pallas_src>
import numpy as np
import jax
import jax.numpy as jnp
from jax.experimental import pallas as pl
from jax.experimental.pallas import tpu as pltpu


def _pos_embed_kernel(lhs_ref, sel_ref, o_ref):
    # lhs_ref: (2D, W+H)    block-diagonal [[col_t, 0], [0, row_t]]
    # sel_ref: (W+H, T)     stacked one-hot selection for this HW tile
    # o_ref:   (2D, T)      one lane-dense tile of the (2D, H*W) slab
    o_ref[...] = jnp.dot(
        lhs_ref[...],
        sel_ref[...],
        preferred_element_type=jnp.float32,
        precision=jax.lax.Precision.HIGHEST,
    )


def _pick_hw_tile(hw: int) -> int:
    """Largest lane-dense tile (multiple of 128) dividing HW with >=2 steps."""
    for cand in (2048, 1024, 512, 256, 128):
        if hw % cand == 0 and hw // cand >= 2:
            return cand
    return hw  # single step; block equals full array dims (always legal)


def position_embedding_learned(x, col_embed_weight, row_embed_weight):
    """x: (N, C, H, W) — only its shape is used (as in the PyTorch module).
    col_embed_weight / row_embed_weight: (num_embeddings >= W/H, D) tables.
    Returns pos of shape (N, 2*D, H, W), float32."""
    N = x.shape[0]
    H, W = x.shape[-2], x.shape[-1]
    D = col_embed_weight.shape[1]
    HW = H * W

    # Same failure mode as the PyTorch module, but fail loudly here.
    assert W <= col_embed_weight.shape[0], "W exceeds col_embed table size"
    assert H <= row_embed_weight.shape[0], "H exceeds row_embed table size"

    # Embedding lookup of arange(W)/arange(H) == the leading rows.  These are
    # tiny (<=50 x D) tables; transpose + block-diagonal packing is O(KB).
    col_t = col_embed_weight[:W].T.astype(jnp.float32)   # (D, W)
    row_t = row_embed_weight[:H].T.astype(jnp.float32)   # (D, H)
    lhs = jnp.zeros((2 * D, W + H), jnp.float32)
    lhs = lhs.at[:D, :W].set(col_t).at[D:, W:].set(row_t)  # (2D, W+H)

    # Static one-hot selection RHS (W+H, HW):
    #   rows 0..W-1   : sel[c,     k] = 1  iff  k %  W == c   (col / x half)
    #   rows W..W+H-1 : sel[W + r, k] = 1  iff  k // W == r   (row / y half)
    k = np.arange(HW)
    sel_np = np.zeros((W + H, HW), np.float32)
    sel_np[k % W, k] = 1.0
    sel_np[W + k // W, k] = 1.0
    sel = jnp.asarray(sel_np)

    tile = _pick_hw_tile(HW)
    grid = (HW // tile,)

    pos2d = pl.pallas_call(
        _pos_embed_kernel,
        out_shape=jax.ShapeDtypeStruct((2 * D, HW), jnp.float32),
        grid_spec=pltpu.PrefetchScalarGridSpec(
            num_scalar_prefetch=0,
            grid=grid,
            in_specs=[
                pl.BlockSpec((2 * D, W + H), lambda t: (0, 0)),
                pl.BlockSpec((W + H, tile), lambda t: (0, t)),
            ],
            out_specs=pl.BlockSpec((2 * D, tile), lambda t: (0, t)),
        ),
        compiler_params=pltpu.CompilerParams(
            dimension_semantics=("parallel",),
        ),
    )(lhs, sel)

    # (2D, HW) -> (2D, H, W) is a free contiguous view; batch broadcast is lazy.
    pos = pos2d.reshape(2 * D, H, W)
    return jnp.broadcast_to(pos[None], (N, 2 * D, H, W))


def position_embedding_learned_ref(x, col_embed_weight, row_embed_weight):
    """Pure-JAX reference mirroring the PyTorch forward."""
    N = x.shape[0]
    H, W = x.shape[-2], x.shape[-1]
    D = col_embed_weight.shape[1]
    x_emb = col_embed_weight[:W]                          # (W, D)
    y_emb = row_embed_weight[:H]                          # (H, D)
    pos = jnp.concatenate(
        [jnp.broadcast_to(x_emb[None, :, :], (H, W, D)),
         jnp.broadcast_to(y_emb[:, None, :], (H, W, D))],
        axis=-1)                                          # (H, W, 2D)
    pos = jnp.transpose(pos, (2, 0, 1))                   # (2D, H, W)
    return jnp.broadcast_to(pos[None], (N, 2 * D, H, W)).astype(jnp.float32)


if __name__ == "__main__":
    key = jax.random.PRNGKey(0)
    N, C, H, W = 2, 4, 16, 16
    num_pos_feats = 32          # small stand-in for the module default of 256
    num_embeddings = 50         # as in nn.Embedding(50, num_pos_feats)

    kx, kc, kr = jax.random.split(key, 3)
    # Only x.shape is consumed by the forward pass (NestedTensor.mask unused).
    x = jax.random.normal(kx, (N, C, H, W), dtype=jnp.float32)
    # nn.init.uniform_ -> U[0, 1)
    col_w = jax.random.uniform(kc, (num_embeddings, num_pos_feats), dtype=jnp.float32)
    row_w = jax.random.uniform(kr, (num_embeddings, num_pos_feats), dtype=jnp.float32)

    pos = position_embedding_learned(x, col_w, row_w)
    pos = jax.block_until_ready(pos)

    ref = position_embedding_learned_ref(x, col_w, row_w)
    assert pos.shape == (N, 2 * num_pos_feats, H, W), pos.shape
    assert jnp.allclose(pos, ref, atol=1e-5, rtol=1e-5), (
        "mismatch vs reference, max abs err = "
        + str(float(jnp.max(jnp.abs(pos - ref)))))
    print("KERNEL_OK")
</pallas_src>

<mosaic_0001>
module attributes {stable_mosaic.version = 11 : i64} {
  func.func @_pos_embed_kernel(%arg0: i32, %arg1: memref<64x32xf32, #tpu.memory_space<vmem>>, %arg2: memref<32x128xf32, #tpu.memory_space<vmem>>, %arg3: memref<64x128xf32, #tpu.memory_space<vmem>>) attributes {dimension_semantics = [#tpu.dimension_semantics<parallel>], iteration_bounds = array<i64: 2>, scalar_prefetch = 0 : i64, scratch_operands = 0 : i64, tpu.core_type = #tpu.core_type<tc>, window_params = [{pipeline_mode = #tpu.pipeline_mode<synchronous>, transform_indices = @transform_0, window_bounds = array<i64: 64, 32>}, {transform_indices = @transform_1, window_bounds = array<i64: 32, 128>}, {transform_indices = @transform_2, window_bounds = array<i64: 64, 128>}]} {
    %c0 = arith.constant 0 : index
    %c0_0 = arith.constant 0 : index
    %0 = vector.load %arg1[%c0, %c0_0] : memref<64x32xf32, #tpu.memory_space<vmem>>, vector<64x32xf32>
    %c0_1 = arith.constant 0 : index
    %c0_2 = arith.constant 0 : index
    %1 = vector.load %arg2[%c0_1, %c0_2] : memref<32x128xf32, #tpu.memory_space<vmem>>, vector<32x128xf32>
    %cst = arith.constant dense<0.000000e+00> : vector<64x128xf32>
    %2 = tpu.matmul %0, %1, %cst {dimension_numbers = #tpu.dot_dimension_numbers<[1], [0], [0], [1], [0, 0, 1, 1], [], []>, precision = #tpu.contract_precision<fp32>} : vector<64x32xf32>, vector<32x128xf32>, vector<64x128xf32> -> vector<64x128xf32>
    %c0_3 = arith.constant 0 : index
    %c0_4 = arith.constant 0 : index
    %3 = vector.load %arg3[%c0_3, %c0_4] : memref<64x128xf32, #tpu.memory_space<vmem>>, vector<64x128xf32>
    tpu.vector_store %arg3[%c0_3, %c0_4], %2 {strides = array<i32>} : memref<64x128xf32, #tpu.memory_space<vmem>>, vector<64x128xf32>,
    return
  }
  func.func @transform_0(%arg0: i32) -> (i32, i32) {
    %c0_i32 = arith.constant 0 : i32
    %c0_i32_0 = arith.constant 0 : i32
    %c0_i32_1 = arith.constant 0 : i32
    return %c0_i32, %c0_i32_0 : i32, i32
  }
  func.func @transform_1(%arg0: i32) -> (i32, i32) {
    %c0_i32 = arith.constant 0 : i32
    %c0_i32_0 = arith.constant 0 : i32
    return %c0_i32, %arg0 : i32, i32
  }
  func.func @transform_2(%arg0: i32) -> (i32, i32) {
    %c0_i32 = arith.constant 0 : i32
    %c0_i32_0 = arith.constant 0 : i32
    return %c0_i32, %arg0 : i32, i32
  }
}

</mosaic_0001>

<llo_original>
// kernel: tpu_custom_call.1
$region0: #{tpu_custom_call.1}
  #allocation0 [shape = 'u32[]', space=smem, size = 0x4, offset = 0x4, fixed_abs, tag = 'smem constant byte address 0x4 - core index']
  #allocation1 [shape = 'u32[72,128]{1,0:T(1,128)}', space=vmem, size = 0x9000, scoped, tag = 'internal scratch']
  %s0 = inlined_call_operand.vmem [shape: f32[64,32], index: 0, kind: input, shape index: {}]
  %s1 = inlined_call_operand.vmem [shape: f32[32,256], index: 1, kind: input, shape index: {}]
  %s2 = inlined_call_operand.hbm [shape: f32[64,256], index: 2, kind: output, shape index: {}]
  %s3 = sld [smem:[#allocation0]]
  $region79: #{tpu_custom_call.1} parent=0
    _
  %s5 = ssub.s32 1, %s3
  %s6 = scalar_select 0, %s5, %s3
  $region1: #{tpu_custom_call.1} parent=0
    #allocation2 [shape = 'u8[32768]{0}', space=vmem, size = 0x8000, scoped, tag = 'input window, operand 1']
    #allocation3 [shape = 'u8[65536]{0}', space=vmem, size = 0x10000, scoped, tag = 'output window, operand 0']
    #allocation4 [shape = 's32[2]{0}', space=sflag, size = 0x8, scoped, tag = 'scoped memory for tpu_custom_call.1']
    %7 = vsyncpa [#allocation4], 0
    %s8 = scalar_lea.sflag [#allocation4], 1
    %9 = vsyncpa %s8, 0
    loop: start=0, step=1, limit=4
    $region2: #{tpu_custom_call.1} parent=1 // loop_pre_header
      _
    $region3: #{tpu_custom_call.1} parent=1 // loop_header
      %s11 = sphi 0, %s15
      %p12 = scmp.ge.s32.totalorder %s11, 4
      %s19 = sphi 0, %s19
      %s21 = sphi 0, %s19
      %s22 = sphi 0, %s21
      %s36 = sphi 0, %s22
      %s42 = sphi 0, %s44
      %s45 = sphi 0, %s42
      %s46 = sphi 0, %s45
      %s62 = sphi 0, %s46
      %s68 = sphi 0, %s70
      %s71 = sphi 0, %s68
      %s72 = sphi 0, %s71
      %s88 = sphi 0, %s72
    $region4: #{tpu_custom_call.1} parent=1 // loop_header_branch
      %14 = sbr.rel (%p12) target = $region8
    $region5: #{tpu_custom_call.1} parent=1 // loop_body
      %s16 = ssub.s32 %s11, 1
      %s17 = ssub.s32 %s11, 2
      %s18 = sadd.s32 %s11, 1
      %s20 = sadd.s32 %s19, 1
      %p23 = scmp.eq.s32.totalorder %s11, 1
      %p24 = scmp.ne.s32.totalorder %s19, %s21
      %p25 = scmp.eq.s32.totalorder %s11, 0
      %p26 = por %p24, %p25
      %p27 = scmp.ne.s32.totalorder %s19, %s21
      %p28 = scmp.eq.s32.totalorder %s16, 1
      %p29 = por %p27, %p28
      %p30 = scmp.ne.s32.totalorder %s21, %s22
      %p31 = scmp.eq.s32.totalorder %s16, 0
      %p32 = por %p30, %p31
      %p33 = scmp.ne.s32.totalorder %s21, %s22
      %p34 = scmp.eq.s32.totalorder %s17, 1
      %p35 = por %p33, %p34
      %p37 = scmp.ne.s32.totalorder %s22, %s36
      %p38 = scmp.eq.s32.totalorder %s17, 0
      %p39 = por %p37, %p38
      %s40 = ssub.s32 %s11, %s18
      %p41 = scmp.eq.s32.totalorder %s40, 0
      %s43 = sadd.s32 %s42, 1
      %s44 = scalar_select %p41, %s42, %s43
      %p47 = pneg %p41
      %p48 = scmp.eq.s32.totalorder %s11, 1
      %p49 = por %p47, %p48
      %p50 = scmp.ne.s32.totalorder %s42, %s45
      %p51 = scmp.eq.s32.totalorder %s11, 0
      %p52 = por %p50, %p51
      %p53 = scmp.ne.s32.totalorder %s42, %s45
      %p54 = scmp.eq.s32.totalorder %s16, 1
      %p55 = por %p53, %p54
      %p56 = scmp.ne.s32.totalorder %s45, %s46
      %p57 = scmp.eq.s32.totalorder %s16, 0
      %p58 = por %p56, %p57
      %p59 = scmp.ne.s32.totalorder %s45, %s46
      %p60 = scmp.eq.s32.totalorder %s17, 1
      %p61 = por %p59, %p60
      %p63 = scmp.ne.s32.totalorder %s46, %s62
      %p64 = scmp.eq.s32.totalorder %s17, 0
      %p65 = por %p63, %p64
      %s66 = ssub.s32 %s11, %s18
      %p67 = scmp.eq.s32.totalorder %s66, 0
      %s69 = sadd.s32 %s68, 1
      %s70 = scalar_select %p67, %s68, %s69
      %p73 = pneg %p67
      %p74 = scmp.eq.s32.totalorder %s11, 1
      %p75 = por %p73, %p74
      %p76 = scmp.ne.s32.totalorder %s68, %s71
      %p77 = scmp.eq.s32.totalorder %s11, 0
      %p78 = por %p76, %p77
      %p79 = scmp.ne.s32.totalorder %s68, %s71
      %p80 = scmp.eq.s32.totalorder %s16, 1
      %p81 = por %p79, %p80
      %p82 = scmp.ne.s32.totalorder %s71, %s72
      %p83 = scmp.eq.s32.totalorder %s16, 0
      %p84 = por %p82, %p83
      %p85 = scmp.ne.s32.totalorder %s71, %s72
      %p86 = scmp.eq.s32.totalorder %s17, 1
      %p87 = por %p85, %p86
      %p89 = scmp.ne.s32.totalorder %s72, %s88
      %p90 = scmp.eq.s32.totalorder %s17, 0
      %p91 = por %p89, %p90
      %p92 = scmp.le.s32.totalorder 1, %s11
      %p93 = scmp.lt.s32.totalorder %s11, 3
      %p94 = pnand %p92, %p93
      %p95 = pneg %p94
      // Predicated region
      $region9: #{tpu_custom_call.1} parent=5 // pred_check
        _
      $region10: #{tpu_custom_call.1} parent=5 // pred_check_branch
        %97 = sbr.rel (%p94) target = $region12
      $region11: #{tpu_custom_call.1} parent=5 // pred_region
        %s98 = ssub.s32 %s11, 1
        // Predicated region
        $region13: #{tpu_custom_call.1} parent=11 // pred_check
          %p99 = pneg %p32
        $region14: #{tpu_custom_call.1} parent=11 // pred_check_branch
          %101 = sbr.rel (%p99) target = $region16
        $region15: #{tpu_custom_call.1} parent=11 // pred_region
          _
        $region16: #{tpu_custom_call.1} parent=11 // pred_fallthru
          _
      $region12: #{tpu_custom_call.1} parent=5 // pred_fallthru
        _
      %p102 = scmp.lt.s32.totalorder %s11, 2
      // Predicated region
      $region17: #{tpu_custom_call.1} parent=5 // pred_check
        %p103 = pneg %p102
      $region18: #{tpu_custom_call.1} parent=5 // pred_check_branch
        %105 = sbr.rel (%p103) target = $region20
      $region19: #{tpu_custom_call.1} parent=5 // pred_region
        // Predicated region
        $region21: #{tpu_custom_call.1} parent=19 // pred_check
          %p106 = pneg %p52
        $region22: #{tpu_custom_call.1} parent=19 // pred_check_branch
          %108 = sbr.rel (%p106) target = $region24
        $region23: #{tpu_custom_call.1} parent=19 // pred_region
          %s109 = sand.u32 %s42, 1
          %s110 = sand.u32 %s42, 1
          %s111 = smul.addr %s110, 32
          %s112 = scalar_lea.vmem [#allocation2], %s111
          %s113 = smul.addr %s11, 8
          %s114 = scalar_lea.vmem %s1, %s113
          // Predicated region
          $region25: #{tpu_custom_call.1} parent=23 // pred_check
            _
          $region26: #{tpu_custom_call.1} parent=23 // pred_check_branch
            %116 = sbr.rel (0) target = $region28
          $region27: #{tpu_custom_call.1} parent=23 // pred_region
            // Predicated region
            $region29: #{tpu_custom_call.1} parent=27 // pred_check
              _
            $region30: #{tpu_custom_call.1} parent=27 // pred_check_branch
              %118 = sbr.rel (0) target = $region32
            $region31: #{tpu_custom_call.1} parent=27 // pred_region
              // Predicated region
              $region44: #{tpu_custom_call.1} parent=31 // pred_check
                _
              $region45: #{tpu_custom_call.1} parent=31 // pred_check_branch
                %140 = sbr.rel (0) target = $region47
              $region46: #{tpu_custom_call.1} parent=31 // pred_region
                loop: start=0, step=1, limit=1
                $region48: #{tpu_custom_call.1} parent=46 // loop_pre_header
                  _
                $region49: #{tpu_custom_call.1} parent=46 // loop_header
                  %s142 = sphi 0, %s146
                  %p143 = scmp.ge.s32.totalorder %s142, 1
                  %s147 = sphi %s114, %s114
                  %s148 = sphi %s112, %s112
                $region50: #{tpu_custom_call.1} parent=46 // loop_header_branch
                  %145 = sbr.rel (%p143) target = $region54
                $region51: #{tpu_custom_call.1} parent=46 // loop_body
                  %v149 = vld [vmem:[%s147] sm:$0xff]
                  %150 = vst [vmem:[%s148] sm:$0xff] %v149
                  %v151 = vld [vmem:[%s147 + $0x10] sm:$0xff]
                  %152 = vst [vmem:[%s148 + $0x8] sm:$0xff] %v151
                  %v153 = vld [vmem:[%s147 + $0x20] sm:$0xff]
                  %154 = vst [vmem:[%s148 + $0x10] sm:$0xff] %v153
                  %v155 = vld [vmem:[%s147 + $0x30] sm:$0xff]
                  %156 = vst [vmem:[%s148 + $0x18] sm:$0xff] %v155
                $region52: #{tpu_custom_call.1} parent=46 // loop_footer
                  %s146 = sadd.s32 1, %s142
                $region53: #{tpu_custom_call.1} parent=46 // loop_footer_branch
                  %141 = sbr.rel target = $region49
                $region54: #{tpu_custom_call.1} parent=46 // loop_exit
                  _
              $region47: #{tpu_custom_call.1} parent=31 // pred_fallthru
                _
              // Predicated region
              $region55: #{tpu_custom_call.1} parent=31 // pred_check
                _
              $region56: #{tpu_custom_call.1} parent=31 // pred_check_branch
                %158 = sbr.rel target = $region58
              $region57: #{tpu_custom_call.1} parent=31 // pred_region
                _
              $region58: #{tpu_custom_call.1} parent=31 // pred_fallthru
                _
            $region32: #{tpu_custom_call.1} parent=27 // pred_fallthru
              _
            // Predicated region
            $region33: #{tpu_custom_call.1} parent=27 // pred_check
              _
            $region34: #{tpu_custom_call.1} parent=27 // pred_check_branch
              %120 = sbr.rel target = $region36
            $region35: #{tpu_custom_call.1} parent=27 // pred_region
              %s122 = ssub.s32 256, 1
              loop: start=0, step=1, limit=1
              $region37: #{tpu_custom_call.1} parent=35 // loop_pre_header
                _
              $region38: #{tpu_custom_call.1} parent=35 // loop_header
                %s124 = sphi 0, %s128
                %p125 = scmp.ge.s32.totalorder %s124, 1
                %s129 = sphi %s114, %s114
                %s130 = sphi %s112, %s112
              $region39: #{tpu_custom_call.1} parent=35 // loop_header_branch
                %127 = sbr.rel (%p125) target = $region43
              $region40: #{tpu_custom_call.1} parent=35 // loop_body
                %v131 = vld [vmem:[%s129] sm:%s122]
                %132 = vst [vmem:[%s130] sm:%s122] %v131
                %v133 = vld [vmem:[%s129 + $0x10] sm:%s122]
                %134 = vst [vmem:[%s130 + $0x8] sm:%s122] %v133
                %v135 = vld [vmem:[%s129 + $0x20] sm:%s122]
                %136 = vst [vmem:[%s130 + $0x10] sm:%s122] %v135
                %v137 = vld [vmem:[%s129 + $0x30] sm:%s122]
                %138 = vst [vmem:[%s130 + $0x18] sm:%s122] %v137
              $region41: #{tpu_custom_call.1} parent=35 // loop_footer
                %s128 = sadd.s32 1, %s124
              $region42: #{tpu_custom_call.1} parent=35 // loop_footer_branch
                %123 = sbr.rel target = $region38
              $region43: #{tpu_custom_call.1} parent=35 // loop_exit
                _
            $region36: #{tpu_custom_call.1} parent=27 // pred_fallthru
              _
          $region28: #{tpu_custom_call.1} parent=23 // pred_fallthru
            _
          %159 = vnop
        $region24: #{tpu_custom_call.1} parent=19 // pred_fallthru
          _
      $region20: #{tpu_custom_call.1} parent=5 // pred_fallthru
        _
      %p160 = scmp.le.s32.totalorder 1, %s11
      %p161 = scmp.lt.s32.totalorder %s11, 3
      %p162 = pnand %p160, %p161
      %p163 = pneg %p162
      // Predicated region
      $region59: #{tpu_custom_call.1} parent=5 // pred_check
        _
      $region60: #{tpu_custom_call.1} parent=5 // pred_check_branch
        %165 = sbr.rel (%p162) target = $region62
      $region61: #{tpu_custom_call.1} parent=5 // pred_region
        %s166 = ssub.s32 %s11, 1
        %s167 = sand.u32 %s45, 1
        %s168 = sand.u32 %s45, 1
        %s169 = smul.addr %s168, 32
        %s170 = scalar_lea.vmem [#allocation2], %s169
        // Predicated region
        $region63: #{tpu_custom_call.1} parent=61 // pred_check
          %p171 = pneg %p58
        $region64: #{tpu_custom_call.1} parent=61 // pred_check_branch
          %173 = sbr.rel (%p171) target = $region66
        $region65: #{tpu_custom_call.1} parent=61 // pred_region
          _
        $region66: #{tpu_custom_call.1} parent=61 // pred_fallthru
          _
        %p174 = pneg %p32
        %p175 = pneg %p29
        %s176 = sand.u32 %s45, 1
        %s177 = sand.u32 %s45, 1
        %s178 = smul.addr %s177, 32
        %s179 = scalar_lea.vmem [#allocation2], %s178
        %p180 = pneg %p58
        %p181 = pneg %p55
        %p182 = pneg %p84
        %p183 = pneg %p81
        %s184 = sand.u32 %s71, 1
        %s185 = scalar_lea.sflag [#allocation4], %s184
        %s186 = sand.u32 %s71, 1
        %s187 = smul.addr %s186, 64
        %s188 = scalar_lea.vmem [#allocation3], %s187
        %v189 = vld [vmem:[%s0] sm:$0xff]
        %v190 = vld [vmem:[%s0 + $0x8] sm:$0xff]
        %v191 = vld [vmem:[%s0 + $0x10] sm:$0xff]
        %v192 = vld [vmem:[%s0 + $0x18] sm:$0xff]
        %v193 = vld [vmem:[%s0 + $0x20] sm:$0xff]
        %v194 = vld [vmem:[%s0 + $0x28] sm:$0xff]
        %v195 = vld [vmem:[%s0 + $0x30] sm:$0xff]
        %v196 = vld [vmem:[%s0 + $0x38] sm:$0xff]
        %v197 = vld [vmem:[%s170] sm:$0xff]
        %v198 = vld [vmem:[%s170 + $0x8] sm:$0xff]
        %v199 = vld [vmem:[%s170 + $0x10] sm:$0xff]
        %v200 = vld [vmem:[%s170 + $0x18] sm:$0xff]
        %vm201 = vcmask 261120
        %v203 = vsel %vm201, %v189, 0
        %v206 = vsel %vm201, %v190, 0
        %v209 = vsel %vm201, %v191, 0
        %v212 = vsel %vm201, %v192, 0
        %v215 = vsel %vm201, %v193, 0
        %v218 = vsel %vm201, %v194, 0
        %v221 = vsel %vm201, %v195, 0
        %v224 = vsel %vm201, %v196, 0
        %226 = vmatpush.msra.mxu0 0.0
        %227 = vmatpush.msra.mxu0 0.0
        %228 = vmatpush.msra.mxu0 0.0
        %229 = vmatpush.msra.mxu0 0.0
        %230 = vmatpush.msra.mxu0 0.0
        %231 = vmatpush.msra.mxu0 0.0
        %232 = vmatpush.msra.mxu0 0.0
        %233 = vmatpush.msra.mxu0 0.0
        %234 = vmatpush.msra.mxu0 0.0
        %235 = vmatpush.msra.mxu0 0.0
        %236 = vmatpush.msra.mxu0 0.0
        %237 = vmatpush.msra.mxu0 0.0
        %v238 = vand.u32 %v200, 4294901760
        %239 = vmatpush.msra.mxu0 %v238
        %v240 = vand.u32 %v199, 4294901760
        %241 = vmatpush.msra.mxu0 %v240
        %v242 = vand.u32 %v198, 4294901760
        %243 = vmatpush.msra.mxu0 %v242
        %v244 = vand.u32 %v197, 4294901760
        %245 = vmatpush.msra.mxu0 %v244
        %v246 = vand.u32 %v203, 4294901760
        %v247 = vsub.f32 %v203, %v246
        %v248 = vand.u32 %v247, 4294901760
        %v249 = vsub.f32 %v247, %v248
        %v250 = vand.u32 %v249, 4294901760
        %251 = vmatmul.f32.gmra.mxu0 %v250
        %v252 = vpop.f32.mrf.mxu0
        %v253 = vadd.f32 0.0, %v252
        %v254 = vand.u32 %v206, 4294901760
        %v255 = vsub.f32 %v206, %v254
        %v256 = vand.u32 %v255, 4294901760
        %v257 = vsub.f32 %v255, %v256
        %v258 = vand.u32 %v257, 4294901760
        %259 = vmatmul.f32.gmra.mxu0 %v258
        %v260 = vpop.f32.mrf.mxu0
        %v261 = vadd.f32 0.0, %v260
        %v262 = vand.u32 %v209, 4294901760
        %v263 = vsub.f32 %v209, %v262
        %v264 = vand.u32 %v263, 4294901760
        %v265 = vsub.f32 %v263, %v264
        %v266 = vand.u32 %v265, 4294901760
        %267 = vmatmul.f32.gmra.mxu0 %v266
        %v268 = vpop.f32.mrf.mxu0
        %v269 = vadd.f32 0.0, %v268
        %v270 = vand.u32 %v212, 4294901760
        %v271 = vsub.f32 %v212, %v270
        %v272 = vand.u32 %v271, 4294901760
        %v273 = vsub.f32 %v271, %v272
        %v274 = vand.u32 %v273, 4294901760
        %275 = vmatmul.f32.gmra.mxu0 %v274
        %v276 = vpop.f32.mrf.mxu0
        %v277 = vadd.f32 0.0, %v276
        %v278 = vand.u32 %v215, 4294901760
        %v279 = vsub.f32 %v215, %v278
        %v280 = vand.u32 %v279, 4294901760
        %v281 = vsub.f32 %v279, %v280
        %v282 = vand.u32 %v281, 4294901760
        %283 = vmatmul.f32.gmra.mxu0 %v282
        %v284 = vpop.f32.mrf.mxu0
        %v285 = vadd.f32 0.0, %v284
        %v286 = vand.u32 %v218, 4294901760
        %v287 = vsub.f32 %v218, %v286
        %v288 = vand.u32 %v287, 4294901760
        %v289 = vsub.f32 %v287, %v288
        %v290 = vand.u32 %v289, 4294901760
        %291 = vmatmul.f32.gmra.mxu0 %v290
        %v292 = vpop.f32.mrf.mxu0
        %v293 = vadd.f32 0.0, %v292
        %v294 = vand.u32 %v221, 4294901760
        %v295 = vsub.f32 %v221, %v294
        %v296 = vand.u32 %v295, 4294901760
        %v297 = vsub.f32 %v295, %v296
        %v298 = vand.u32 %v297, 4294901760
        %299 = vmatmul.f32.gmra.mxu0 %v298
        %v300 = vpop.f32.mrf.mxu0
        %v301 = vadd.f32 0.0, %v300
        %v302 = vand.u32 %v224, 4294901760
        %v303 = vsub.f32 %v224, %v302
        %v304 = vand.u32 %v303, 4294901760
        %v305 = vsub.f32 %v303, %v304
        %v306 = vand.u32 %v305, 4294901760
        %307 = vmatmul.f32.gmra.mxu0 %v306
        %v308 = vpop.f32.mrf.mxu0
        %v309 = vadd.f32 0.0, %v308
        %310 = vdwg.mxu0
        %311 = vmatpush.msra.mxu0 0.0
        %312 = vmatpush.msra.mxu0 0.0
        %313 = vmatpush.msra.mxu0 0.0
        %314 = vmatpush.msra.mxu0 0.0
        %315 = vmatpush.msra.mxu0 0.0
        %316 = vmatpush.msra.mxu0 0.0
        %317 = vmatpush.msra.mxu0 0.0
        %318 = vmatpush.msra.mxu0 0.0
        %319 = vmatpush.msra.mxu0 0.0
        %320 = vmatpush.msra.mxu0 0.0
        %321 = vmatpush.msra.mxu0 0.0
        %322 = vmatpush.msra.mxu0 0.0
        %v323 = vand.u32 %v200, 4294901760
        %v324 = vsub.f32 %v200, %v323
        %v325 = vand.u32 %v324, 4294901760
        %v326 = vsub.f32 %v324, %v325
        %v327 = vand.u32 %v326, 4294901760
        %328 = vmatpush.msra.mxu0 %v327
        %v329 = vand.u32 %v199, 4294901760
        %v330 = vsub.f32 %v199, %v329
        %v331 = vand.u32 %v330, 4294901760
        %v332 = vsub.f32 %v330, %v331
        %v333 = vand.u32 %v332, 4294901760
        %334 = vmatpush.msra.mxu0 %v333
        %v335 = vand.u32 %v198, 4294901760
        %v336 = vsub.f32 %v198, %v335
        %v337 = vand.u32 %v336, 4294901760
        %v338 = vsub.f32 %v336, %v337
        %v339 = vand.u32 %v338, 4294901760
        %340 = vmatpush.msra.mxu0 %v339
        %v341 = vand.u32 %v197, 4294901760
        %v342 = vsub.f32 %v197, %v341
        %v343 = vand.u32 %v342, 4294901760
        %v344 = vsub.f32 %v342, %v343
        %v345 = vand.u32 %v344, 4294901760
        %346 = vmatpush.msra.mxu0 %v345
        %v347 = vand.u32 %v203, 4294901760
        %348 = vmatmul.f32.gmra.mxu0 %v347
        %v349 = vpop.f32.mrf.mxu0
        %v350 = vadd.f32 %v253, %v349
        %v351 = vand.u32 %v206, 4294901760
        %352 = vmatmul.f32.gmra.mxu0 %v351
        %v353 = vpop.f32.mrf.mxu0
        %v354 = vadd.f32 %v261, %v353
        %v355 = vand.u32 %v209, 4294901760
        %356 = vmatmul.f32.gmra.mxu0 %v355
        %v357 = vpop.f32.mrf.mxu0
        %v358 = vadd.f32 %v269, %v357
        %v359 = vand.u32 %v212, 4294901760
        %360 = vmatmul.f32.gmra.mxu0 %v359
        %v361 = vpop.f32.mrf.mxu0
        %v362 = vadd.f32 %v277, %v361
        %v363 = vand.u32 %v215, 4294901760
        %364 = vmatmul.f32.gmra.mxu0 %v363
        %v365 = vpop.f32.mrf.mxu0
        %v366 = vadd.f32 %v285, %v365
        %v367 = vand.u32 %v218, 4294901760
        %368 = vmatmul.f32.gmra.mxu0 %v367
        %v369 = vpop.f32.mrf.mxu0
        %v370 = vadd.f32 %v293, %v369
        %v371 = vand.u32 %v221, 4294901760
        %372 = vmatmul.f32.gmra.mxu0 %v371
        %v373 = vpop.f32.mrf.mxu0
        %v374 = vadd.f32 %v301, %v373
        %v375 = vand.u32 %v224, 4294901760
        %376 = vmatmul.f32.gmra.mxu0 %v375
        %v377 = vpop.f32.mrf.mxu0
        %v378 = vadd.f32 %v309, %v377
        %379 = vdwg.mxu0
        %380 = vmatpush.msra.mxu0 0.0
        %381 = vmatpush.msra.mxu0 0.0
        %382 = vmatpush.msra.mxu0 0.0
        %383 = vmatpush.msra.mxu0 0.0
        %384 = vmatpush.msra.mxu0 0.0
        %385 = vmatpush.msra.mxu0 0.0
        %386 = vmatpush.msra.mxu0 0.0
        %387 = vmatpush.msra.mxu0 0.0
        %388 = vmatpush.msra.mxu0 0.0
        %389 = vmatpush.msra.mxu0 0.0
        %390 = vmatpush.msra.mxu0 0.0
        %391 = vmatpush.msra.mxu0 0.0
        %v392 = vand.u32 %v200, 4294901760
        %v393 = vsub.f32 %v200, %v392
        %394 = vmatpush.msra.mxu0 %v393
        %v395 = vand.u32 %v199, 4294901760
        %v396 = vsub.f32 %v199, %v395
        %397 = vmatpush.msra.mxu0 %v396
        %v398 = vand.u32 %v198, 4294901760
        %v399 = vsub.f32 %v198, %v398
        %400 = vmatpush.msra.mxu0 %v399
        %v401 = vand.u32 %v197, 4294901760
        %v402 = vsub.f32 %v197, %v401
        %403 = vmatpush.msra.mxu0 %v402
        %v404 = vand.u32 %v203, 4294901760
        %v405 = vsub.f32 %v203, %v404
        %406 = vmatmul.f32.gmra.mxu0 %v405
        %v407 = vpop.f32.mrf.mxu0
        %v408 = vadd.f32 %v350, %v407
        %v409 = vand.u32 %v206, 4294901760
        %v410 = vsub.f32 %v206, %v409
        %411 = vmatmul.f32.gmra.mxu0 %v410
        %v412 = vpop.f32.mrf.mxu0
        %v413 = vadd.f32 %v354, %v412
        %v414 = vand.u32 %v209, 4294901760
        %v415 = vsub.f32 %v209, %v414
        %416 = vmatmul.f32.gmra.mxu0 %v415
        %v417 = vpop.f32.mrf.mxu0
        %v418 = vadd.f32 %v358, %v417
        %v419 = vand.u32 %v212, 4294901760
        %v420 = vsub.f32 %v212, %v419
        %421 = vmatmul.f32.gmra.mxu0 %v420
        %v422 = vpop.f32.mrf.mxu0
        %v423 = vadd.f32 %v362, %v422
        %v424 = vand.u32 %v215, 4294901760
        %v425 = vsub.f32 %v215, %v424
        %426 = vmatmul.f32.gmra.mxu0 %v425
        %v427 = vpop.f32.mrf.mxu0
        %v428 = vadd.f32 %v366, %v427
        %v429 = vand.u32 %v218, 4294901760
        %v430 = vsub.f32 %v218, %v429
        %431 = vmatmul.f32.gmra.mxu0 %v430
        %v432 = vpop.f32.mrf.mxu0
        %v433 = vadd.f32 %v370, %v432
        %v434 = vand.u32 %v221, 4294901760
        %v435 = vsub.f32 %v221, %v434
        %436 = vmatmul.f32.gmra.mxu0 %v435
        %v437 = vpop.f32.mrf.mxu0
        %v438 = vadd.f32 %v374, %v437
        %v439 = vand.u32 %v224, 4294901760
        %v440 = vsub.f32 %v224, %v439
        %441 = vmatmul.f32.gmra.mxu0 %v440
        %v442 = vpop.f32.mrf.mxu0
        %v443 = vadd.f32 %v378, %v442
        %444 = vdwg.mxu0
        %445 = vmatpush.msra.mxu0 0.0
        %446 = vmatpush.msra.mxu0 0.0
        %447 = vmatpush.msra.mxu0 0.0
        %448 = vmatpush.msra.mxu0 0.0
        %449 = vmatpush.msra.mxu0 0.0
        %450 = vmatpush.msra.mxu0 0.0
        %451 = vmatpush.msra.mxu0 0.0
        %452 = vmatpush.msra.mxu0 0.0
        %453 = vmatpush.msra.mxu0 0.0
        %454 = vmatpush.msra.mxu0 0.0
        %455 = vmatpush.msra.mxu0 0.0
        %456 = vmatpush.msra.mxu0 0.0
        %v457 = vand.u32 %v200, 4294901760
        %458 = vmatpush.msra.mxu0 %v457
        %v459 = vand.u32 %v199, 4294901760
        %460 = vmatpush.msra.mxu0 %v459
        %v461 = vand.u32 %v198, 4294901760
        %462 = vmatpush.msra.mxu0 %v461
        %v463 = vand.u32 %v197, 4294901760
        %464 = vmatpush.msra.mxu0 %v463
        %v465 = vand.u32 %v203, 4294901760
        %v466 = vsub.f32 %v203, %v465
        %v467 = vand.u32 %v466, 4294901760
        %468 = vmatmul.f32.gmra.mxu0 %v467
        %v469 = vpop.f32.mrf.mxu0
        %v470 = vadd.f32 %v408, %v469
        %v471 = vand.u32 %v206, 4294901760
        %v472 = vsub.f32 %v206, %v471
        %v473 = vand.u32 %v472, 4294901760
        %474 = vmatmul.f32.gmra.mxu0 %v473
        %v475 = vpop.f32.mrf.mxu0
        %v476 = vadd.f32 %v413, %v475
        %v477 = vand.u32 %v209, 4294901760
        %v478 = vsub.f32 %v209, %v477
        %v479 = vand.u32 %v478, 4294901760
        %480 = vmatmul.f32.gmra.mxu0 %v479
        %v481 = vpop.f32.mrf.mxu0
        %v482 = vadd.f32 %v418, %v481
        %v483 = vand.u32 %v212, 4294901760
        %v484 = vsub.f32 %v212, %v483
        %v485 = vand.u32 %v484, 4294901760
        %486 = vmatmul.f32.gmra.mxu0 %v485
        %v487 = vpop.f32.mrf.mxu0
        %v488 = vadd.f32 %v423, %v487
        %v489 = vand.u32 %v215, 4294901760
        %v490 = vsub.f32 %v215, %v489
        %v491 = vand.u32 %v490, 4294901760
        %492 = vmatmul.f32.gmra.mxu0 %v491
        %v493 = vpop.f32.mrf.mxu0
        %v494 = vadd.f32 %v428, %v493
        %v495 = vand.u32 %v218, 4294901760
        %v496 = vsub.f32 %v218, %v495
        %v497 = vand.u32 %v496, 4294901760
        %498 = vmatmul.f32.gmra.mxu0 %v497
        %v499 = vpop.f32.mrf.mxu0
        %v500 = vadd.f32 %v433, %v499
        %v501 = vand.u32 %v221, 4294901760
        %v502 = vsub.f32 %v221, %v501
        %v503 = vand.u32 %v502, 4294901760
        %504 = vmatmul.f32.gmra.mxu0 %v503
        %v505 = vpop.f32.mrf.mxu0
        %v506 = vadd.f32 %v438, %v505
        %v507 = vand.u32 %v224, 4294901760
        %v508 = vsub.f32 %v224, %v507
        %v509 = vand.u32 %v508, 4294901760
        %510 = vmatmul.f32.gmra.mxu0 %v509
        %v511 = vpop.f32.mrf.mxu0
        %v512 = vadd.f32 %v443, %v511
        %513 = vdwg.mxu0
        %514 = vmatpush.msra.mxu0 0.0
        %515 = vmatpush.msra.mxu0 0.0
        %516 = vmatpush.msra.mxu0 0.0
        %517 = vmatpush.msra.mxu0 0.0
        %518 = vmatpush.msra.mxu0 0.0
        %519 = vmatpush.msra.mxu0 0.0
        %520 = vmatpush.msra.mxu0 0.0
        %521 = vmatpush.msra.mxu0 0.0
        %522 = vmatpush.msra.mxu0 0.0
        %523 = vmatpush.msra.mxu0 0.0
        %524 = vmatpush.msra.mxu0 0.0
        %525 = vmatpush.msra.mxu0 0.0
        %v526 = vand.u32 %v200, 4294901760
        %v527 = vsub.f32 %v200, %v526
        %v528 = vand.u32 %v527, 4294901760
        %529 = vmatpush.msra.mxu0 %v528
        %v530 = vand.u32 %v199, 4294901760
        %v531 = vsub.f32 %v199, %v530
        %v532 = vand.u32 %v531, 4294901760
        %533 = vmatpush.msra.mxu0 %v532
        %v534 = vand.u32 %v198, 4294901760
        %v535 = vsub.f32 %v198, %v534
        %v536 = vand.u32 %v535, 4294901760
        %537 = vmatpush.msra.mxu0 %v536
        %v538 = vand.u32 %v197, 4294901760
        %v539 = vsub.f32 %v197, %v538
        %v540 = vand.u32 %v539, 4294901760
        %541 = vmatpush.msra.mxu0 %v540
        %v542 = vand.u32 %v203, 4294901760
        %543 = vmatmul.f32.gmra.mxu0 %v542
        %v544 = vpop.f32.mrf.mxu0
        %v545 = vadd.f32 %v470, %v544
        %v546 = vand.u32 %v206, 4294901760
        %547 = vmatmul.f32.gmra.mxu0 %v546
        %v548 = vpop.f32.mrf.mxu0
        %v549 = vadd.f32 %v476, %v548
        %v550 = vand.u32 %v209, 4294901760
        %551 = vmatmul.f32.gmra.mxu0 %v550
        %v552 = vpop.f32.mrf.mxu0
        %v553 = vadd.f32 %v482, %v552
        %v554 = vand.u32 %v212, 4294901760
        %555 = vmatmul.f32.gmra.mxu0 %v554
        %v556 = vpop.f32.mrf.mxu0
        %v557 = vadd.f32 %v488, %v556
        %v558 = vand.u32 %v215, 4294901760
        %559 = vmatmul.f32.gmra.mxu0 %v558
        %v560 = vpop.f32.mrf.mxu0
        %v561 = vadd.f32 %v494, %v560
        %v562 = vand.u32 %v218, 4294901760
        %563 = vmatmul.f32.gmra.mxu0 %v562
        %v564 = vpop.f32.mrf.mxu0
        %v565 = vadd.f32 %v500, %v564
        %v566 = vand.u32 %v221, 4294901760
        %567 = vmatmul.f32.gmra.mxu0 %v566
        %v568 = vpop.f32.mrf.mxu0
        %v569 = vadd.f32 %v506, %v568
        %v570 = vand.u32 %v224, 4294901760
        %571 = vmatmul.f32.gmra.mxu0 %v570
        %v572 = vpop.f32.mrf.mxu0
        %v573 = vadd.f32 %v512, %v572
        %574 = vdwg.mxu0
        %575 = vmatpush.msra.mxu0 0.0
        %576 = vmatpush.msra.mxu0 0.0
        %577 = vmatpush.msra.mxu0 0.0
        %578 = vmatpush.msra.mxu0 0.0
        %579 = vmatpush.msra.mxu0 0.0
        %580 = vmatpush.msra.mxu0 0.0
        %581 = vmatpush.msra.mxu0 0.0
        %582 = vmatpush.msra.mxu0 0.0
        %583 = vmatpush.msra.mxu0 0.0
        %584 = vmatpush.msra.mxu0 0.0
        %585 = vmatpush.msra.mxu0 0.0
        %586 = vmatpush.msra.mxu0 0.0
        %v587 = vand.u32 %v200, 4294901760
        %588 = vmatpush.msra.mxu0 %v587
        %v589 = vand.u32 %v199, 4294901760
        %590 = vmatpush.msra.mxu0 %v589
        %v591 = vand.u32 %v198, 4294901760
        %592 = vmatpush.msra.mxu0 %v591
        %v593 = vand.u32 %v197, 4294901760
        %594 = vmatpush.msra.mxu0 %v593
        %v595 = vand.u32 %v203, 4294901760
        %596 = vmatmul.f32.gmra.mxu0 %v595
        %v597 = vpop.f32.mrf.mxu0
        %v598 = vadd.f32 %v545, %v597
        %v599 = vand.u32 %v206, 4294901760
        %600 = vmatmul.f32.gmra.mxu0 %v599
        %v601 = vpop.f32.mrf.mxu0
        %v602 = vadd.f32 %v549, %v601
        %v603 = vand.u32 %v209, 4294901760
        %604 = vmatmul.f32.gmra.mxu0 %v603
        %v605 = vpop.f32.mrf.mxu0
        %v606 = vadd.f32 %v553, %v605
        %v607 = vand.u32 %v212, 4294901760
        %608 = vmatmul.f32.gmra.mxu0 %v607
        %v609 = vpop.f32.mrf.mxu0
        %v610 = vadd.f32 %v557, %v609
        %v611 = vand.u32 %v215, 4294901760
        %612 = vmatmul.f32.gmra.mxu0 %v611
        %v613 = vpop.f32.mrf.mxu0
        %v614 = vadd.f32 %v561, %v613
        %v615 = vand.u32 %v218, 4294901760
        %616 = vmatmul.f32.gmra.mxu0 %v615
        %v617 = vpop.f32.mrf.mxu0
        %v618 = vadd.f32 %v565, %v617
        %v619 = vand.u32 %v221, 4294901760
        %620 = vmatmul.f32.gmra.mxu0 %v619
        %v621 = vpop.f32.mrf.mxu0
        %v622 = vadd.f32 %v569, %v621
        %v623 = vand.u32 %v224, 4294901760
        %624 = vmatmul.f32.gmra.mxu0 %v623
        %v625 = vpop.f32.mrf.mxu0
        %v626 = vadd.f32 %v573, %v625
        %627 = vdwg.mxu0
        %628 = vst [vmem:[%s188] sm:$0xff] %v598
        %629 = vst [vmem:[%s188 + $0x8] sm:$0xff] %v602
        %630 = vst [vmem:[%s188 + $0x10] sm:$0xff] %v606
        %631 = vst [vmem:[%s188 + $0x18] sm:$0xff] %v610
        %632 = vst [vmem:[%s188 + $0x20] sm:$0xff] %v614
        %633 = vst [vmem:[%s188 + $0x28] sm:$0xff] %v618
        %634 = vst [vmem:[%s188 + $0x30] sm:$0xff] %v622
        %635 = vst [vmem:[%s188 + $0x38] sm:$0xff] %v626
        %s636 = sand.u32 %s71, 1
        %s637 = scalar_lea.sflag [#allocation4], %s636
        %s638 = sand.u32 %s71, 1
        %s639 = smul.addr %s638, 64
        %s640 = scalar_lea.vmem [#allocation3], %s639
        // Predicated region
        $region67: #{tpu_custom_call.1} parent=61 // pred_check
          %p641 = pneg %p81
        $region68: #{tpu_custom_call.1} parent=61 // pred_check_branch
          %643 = sbr.rel (%p641) target = $region70
        $region69: #{tpu_custom_call.1} parent=61 // pred_region
          %645 = vsyncadd %s637, 0
          %s646 = smul.addr %s16, 8
          %s647 = scalar_lea.hbm %s2, %s646
          %s648 = sshll.u32 %s640, 4
          %s649 = int_to_ptr.vmem [resolvable:$true] %s648
          %s650 = sshll.u32 %s647, 4
          %s651 = int_to_ptr.hbm [resolvable:$true] %s650
          %656 = dma.vmem_to_hbm [thread:$0]  %s649, 1024, %s651, %s637, 128, 256, 8
        $region70: #{tpu_custom_call.1} parent=61 // pred_fallthru
          _
      $region62: #{tpu_custom_call.1} parent=5 // pred_fallthru
        _
      %p657 = scmp.le.s32.totalorder 2, %s11
      // Predicated region
      $region71: #{tpu_custom_call.1} parent=5 // pred_check
        %p658 = pneg %p657
      $region72: #{tpu_custom_call.1} parent=5 // pred_check_branch
        %660 = sbr.rel (%p658) target = $region74
      $region73: #{tpu_custom_call.1} parent=5 // pred_region
        %s661 = ssub.s32 %s11, 2
        // Predicated region
        $region75: #{tpu_custom_call.1} parent=73 // pred_check
          %p662 = pneg %p87
        $region76: #{tpu_custom_call.1} parent=73 // pred_check_branch
          %664 = sbr.rel (%p662) target = $region78
        $region77: #{tpu_custom_call.1} parent=73 // pred_region
          %s665 = sand.u32 %s72, 1
          %s666 = scalar_lea.sflag [#allocation4], %s665
          %s667 = sand.u32 %s72, 1
          %s668 = smul.addr %s667, 64
          %s669 = scalar_lea.vmem [#allocation3], %s668
          %671 = dma.done %s666, 1024
        $region78: #{tpu_custom_call.1} parent=73 // pred_fallthru
          _
      $region74: #{tpu_custom_call.1} parent=5 // pred_fallthru
        _
    $region6: #{tpu_custom_call.1} parent=1 // loop_footer
      %s15 = sadd.s32 1, %s11
    $region7: #{tpu_custom_call.1} parent=1 // loop_footer_branch
      %10 = sbr.rel target = $region3
    $region8: #{tpu_custom_call.1} parent=1 // loop_exit
      _
    %672 = vsyncpa [#allocation4], 1
    %s673 = scalar_lea.sflag [#allocation4], 1
    %674 = vsyncpa %s673, 1

</llo_original>
